<compile_context>
chip_gen: v7x
topology: tpu7x:2x2x1
jax: 0.10.0
libtpu: 0.0.40
codegen_flags: <defaults>
</compile_context>

<pallas_src>
import functools

import jax
import jax.numpy as jnp
from jax.experimental import pallas as pl
from jax.experimental.pallas import tpu as pltpu

BN_EPS = 1e-5
_NEG_FILL = -1e30  # bias fill for padded softmax columns -> exp() underflows to exactly 0


def _round_up(v, m):
    return (v + m - 1) // m * m


# ----------------------------------------------------------------------------- kernel

def _linear_bn_relu(h_bf16, w_bf16, gamma, beta, inv_n, row_mask):
    """Linear (bias dropped: cancelled by BN mean) + BatchNorm1d (training batch stats,
    single-pass sum/sumsq, clamped variance, folded affine) + ReLU.

    Matmul operands are bf16 (MXU native); stats/affine math is f32.  Returns bf16 so the
    next layer's matmul consumes it directly and the live activation stays half-width."""
    y = jnp.dot(h_bf16, w_bf16, preferred_element_type=jnp.float32)
    s = jnp.sum(y, axis=0, keepdims=True)
    sq = jnp.sum(y * y, axis=0, keepdims=True)
    mean = s * inv_n
    var = jnp.maximum(sq * inv_n - mean * mean, 0.0)   # clamp: f32 cancellation can go negative
    scale = gamma * jax.lax.rsqrt(var + BN_EPS)        # padded cols: gamma=0 -> scale=0
    shift = beta - mean * scale                        # padded cols: beta=0  -> shift=0
    z = jnp.maximum(y * scale + shift, 0.0)
    if row_mask is not None:
        # fused select + cast: keep zero-padded batch rows exactly zero so they do not
        # pollute the next layer's batch statistics.
        return jnp.where(row_mask, z, 0.0).astype(jnp.bfloat16)
    return z.astype(jnp.bfloat16)


def prediction_kernel(n_enc, n_dec_hidden, real_num, *refs):
    """refs layout:
       x_ref,
       [enc: w, gamma, beta] * n_enc,
       [dec hidden: w, gamma, beta] * n_dec_hidden,
       [dec last: w, b],
       out_ref, lat_ref
    """
    x_ref = refs[0]
    idx = 1
    enc_params = []
    for _ in range(n_enc):
        enc_params.append(refs[idx:idx + 3])
        idx += 3
    dec_hidden_params = []
    for _ in range(n_dec_hidden):
        dec_hidden_params.append(refs[idx:idx + 3])
        idx += 3
    w_last_ref = refs[idx]
    b_last_ref = refs[idx + 1]
    out_ref = refs[idx + 2]
    lat_ref = refs[idx + 3]

    num_pad = x_ref.shape[0]
    inv_n = 1.0 / float(real_num)
    if num_pad > real_num:
        rows = jax.lax.broadcasted_iota(jnp.int32, (num_pad, 1), 0)
        row_mask = rows < real_num
    else:
        row_mask = None

    h = x_ref[...]  # bf16, zero-padded rows/cols

    # ---- encoder: (Linear -> BN -> ReLU) x n_enc ----
    for (w_r, g_r, b_r) in enc_params:
        h = _linear_bn_relu(h, w_r[...], g_r[...], b_r[...], inv_n, row_mask)

    lat_ref[...] = h.astype(lat_ref.dtype)  # latent = encoder output

    # ---- decoder hidden layers: (Linear -> BN -> ReLU) x n_dec_hidden ----
    for (w_r, g_r, b_r) in dec_hidden_params:
        h = _linear_bn_relu(h, w_r[...], g_r[...], b_r[...], inv_n, row_mask)

    # ---- final Linear (bias kept) + Softmax(dim=1); padded cols carry -1e30 bias ----
    logits = jnp.dot(h, w_last_ref[...], preferred_element_type=jnp.float32) + b_last_ref[...]
    m = jnp.max(logits, axis=1, keepdims=True)
    e = jnp.exp(logits - m)
    denom = jnp.sum(e, axis=1, keepdims=True)
    out_ref[...] = (e * pl.reciprocal(denom, approx=True)).astype(out_ref.dtype)


# ----------------------------------------------------------------------------- wrapper

def _pad2(a, rows, cols, fill=0.0, dtype=jnp.float32):
    out = jnp.full((rows, cols), fill, dtype=dtype)
    return out.at[:a.shape[0], :a.shape[1]].set(a.astype(dtype))


def make_prediction_params(key, prediction_dim):
    """Parameter init mirroring the PyTorch module's shapes (Linear weights stored as
    [in, out]; BatchNorm gamma=1, beta=0).  Biases are kept here (as in PyTorch); the
    kernel drops the ones that feed a BN layer because the batch mean cancels them."""
    depth = len(prediction_dim) - 1
    params = {"enc": [], "dec_hidden": [], "dec_last": None}
    keys = jax.random.split(key, 2 * depth)

    for i in range(depth):
        fan_in, fan_out = prediction_dim[i], prediction_dim[i + 1]
        bound = 1.0 / jnp.sqrt(fan_in)
        kw, kb = jax.random.split(keys[i])
        w = jax.random.uniform(kw, (fan_in, fan_out), jnp.float32, -bound, bound)
        b = jax.random.uniform(kb, (1, fan_out), jnp.float32, -bound, bound)
        gamma = jnp.ones((1, fan_out), jnp.float32)
        beta = jnp.zeros((1, fan_out), jnp.float32)
        params["enc"].append((w, b, gamma, beta))

    for j, i in enumerate(range(depth, 0, -1)):
        fan_in, fan_out = prediction_dim[i], prediction_dim[i - 1]
        bound = 1.0 / jnp.sqrt(fan_in)
        kw, kb = jax.random.split(keys[depth + j])
        w = jax.random.uniform(kw, (fan_in, fan_out), jnp.float32, -bound, bound)
        b = jax.random.uniform(kb, (1, fan_out), jnp.float32, -bound, bound)
        if i > 1:
            gamma = jnp.ones((1, fan_out), jnp.float32)
            beta = jnp.zeros((1, fan_out), jnp.float32)
            params["dec_hidden"].append((w, b, gamma, beta))
        else:
            params["dec_last"] = (w, b)
    return params


def prediction_forward(x, params, prediction_dim):
    """Runs the whole Prediction.forward inside one Pallas kernel (lane-dense padded)."""
    num, feat_dim = x.shape
    latent_dim = prediction_dim[-1]
    n_enc = len(params["enc"])
    n_dec_hidden = len(params["dec_hidden"])

    num_pad = _round_up(max(num, 16), 16)      # 16-row multiple: native bf16 sublane packing
    feat_pad = _round_up(feat_dim, 128)
    latent_pad = _round_up(latent_dim, 128)

    flat_inputs = [_pad2(x, num_pad, feat_pad, dtype=jnp.bfloat16)]

    def add_bn_layer(w, g, be):
        ip, op = _round_up(w.shape[0], 128), _round_up(w.shape[1], 128)
        flat_inputs.append(_pad2(w, ip, op, dtype=jnp.bfloat16))   # bias dropped (BN cancels)
        flat_inputs.append(_pad2(g, 1, op, dtype=jnp.float32))     # padded gamma = 0
        flat_inputs.append(_pad2(be, 1, op, dtype=jnp.float32))    # padded beta  = 0

    for (w, _b, g, be) in params["enc"]:
        add_bn_layer(w, g, be)
    for (w, _b, g, be) in params["dec_hidden"]:
        add_bn_layer(w, g, be)
    w_last, b_last = params["dec_last"]
    ip, op = _round_up(w_last.shape[0], 128), _round_up(w_last.shape[1], 128)
    flat_inputs.append(_pad2(w_last, ip, op, dtype=jnp.bfloat16))
    flat_inputs.append(_pad2(b_last, 1, op, fill=_NEG_FILL, dtype=jnp.float32))

    vmem_spec = pl.BlockSpec(memory_space=pltpu.MemorySpace.VMEM)
    in_specs = [vmem_spec] * len(flat_inputs)
    out_specs = (vmem_spec, vmem_spec)
    # Softmax probabilities written back in bf16 (halves the dominant output HBM bytes);
    # latent kept f32.
    out_shape = (jax.ShapeDtypeStruct((num_pad, feat_pad), jnp.bfloat16),
                 jax.ShapeDtypeStruct((num_pad, latent_pad), jnp.float32))

    dims_pad = [_round_up(d, 128) for d in prediction_dim]
    depth = len(prediction_dim) - 1
    max_pad = max(dims_pad)

    # ---- explicit VMEM budget (inputs + outputs + live activation workspace, 25% headroom)
    bytes_in = sum(int(a.size) * a.dtype.itemsize for a in flat_inputs)
    bytes_out = num_pad * feat_pad * 2 + num_pad * latent_pad * 4
    act_workspace = num_pad * max_pad * (4 + 4 + 2 + 2)   # y f32, f32 temps, 2x bf16 h
    vmem_budget = int(1.25 * (bytes_in + bytes_out + act_workspace))
    vmem_limit = min(max(vmem_budget, 16 * 1024 * 1024), 64 * 1024 * 1024)  # valid on v5e/v6e/v7x

    # ---- advisory cost hint for the surrounding XLA schedule
    mm_sum = sum(dims_pad[i] * dims_pad[i + 1] for i in range(depth))
    flops = 2 * num_pad * (2 * mm_sum)                    # encoder + mirrored decoder
    transcendentals = num_pad * feat_pad + num_pad + 2 * sum(dims_pad[1:])  # exp + recip + rsqrt
    cost = pl.CostEstimate(flops=int(flops), transcendentals=int(transcendentals),
                           bytes_accessed=int(bytes_in + bytes_out))

    kernel = functools.partial(prediction_kernel, n_enc, n_dec_hidden, num)

    out_p, lat_p = pl.pallas_call(
        kernel,
        out_shape=out_shape,
        in_specs=in_specs,
        out_specs=out_specs,
        cost_estimate=cost,
        compiler_params=pltpu.CompilerParams(vmem_limit_bytes=vmem_limit),
    )(*flat_inputs)

    output = out_p[:num, :feat_dim].astype(jnp.float32)   # host-side upcast after slicing
    latent = lat_p[:num, :latent_dim]
    return output, latent


# ----------------------------------------------------------------------------- reference

def prediction_reference(x, params):
    """Pure-JAX reference faithful to the PyTorch forward (training-mode BN, biases kept,
    two-pass variance, exact softmax), mirroring the kernel's bf16-matmul / f32-accumulate
    precision so the comparison is meaningful."""
    def dot_bf16(h, w):
        return jnp.dot(h.astype(jnp.bfloat16), w.astype(jnp.bfloat16),
                       preferred_element_type=jnp.float32)

    h = x.astype(jnp.float32)
    for (w, b, g, be) in params["enc"]:
        y = dot_bf16(h, w) + b
        mean = jnp.mean(y, axis=0, keepdims=True)
        var = jnp.mean((y - mean) ** 2, axis=0, keepdims=True)
        h = jnp.maximum((y - mean) / jnp.sqrt(var + BN_EPS) * g + be, 0.0)
    latent = h
    for (w, b, g, be) in params["dec_hidden"]:
        y = dot_bf16(h, w) + b
        mean = jnp.mean(y, axis=0, keepdims=True)
        var = jnp.mean((y - mean) ** 2, axis=0, keepdims=True)
        h = jnp.maximum((y - mean) / jnp.sqrt(var + BN_EPS) * g + be, 0.0)
    w, b = params["dec_last"]
    logits = dot_bf16(h, w) + b
    return jax.nn.softmax(logits, axis=1), latent


# ----------------------------------------------------------------------------- main

if __name__ == "__main__":
    # prediction_dim: [feat_dim, hidden, latent_dim]
    prediction_dim = [32, 64, 16]
    num = 8

    key = jax.random.PRNGKey(0)
    kx, kp = jax.random.split(key)
    x = jax.random.normal(kx, (num, prediction_dim[0]), dtype=jnp.float32)
    params = make_prediction_params(kp, prediction_dim)

    output, latent = prediction_forward(x, params, prediction_dim)
    jax.block_until_ready((output, latent))

    out_ref, lat_ref = prediction_reference(x, params)
    assert output.shape == (num, prediction_dim[0])
    assert latent.shape == (num, prediction_dim[-1])
    # Tolerances cover bf16 matmul operands / bf16 inter-layer activations / bf16 output,
    # single-pass BN stats and the EUP approximate reciprocal.
    assert jnp.allclose(latent, lat_ref, atol=1e-2, rtol=1e-2), \
        float(jnp.max(jnp.abs(latent - lat_ref)))
    assert jnp.allclose(output, out_ref, atol=1.5e-2, rtol=1.5e-2), \
        float(jnp.max(jnp.abs(output - out_ref)))
    # softmax rows sum to ~1 (approx reciprocal + bf16 output rounding)
    assert jnp.allclose(jnp.sum(output, axis=1), jnp.ones((num,)), atol=2.5e-2)

    print("KERNEL_OK")
</pallas_src>

<mosaic_0001>
module attributes {stable_mosaic.version = 11 : i64} {
  func.func @prediction_kernel(%arg0: memref<16x128xbf16, #tpu.memory_space<vmem>>, %arg1: memref<128x128xbf16, #tpu.memory_space<vmem>>, %arg2: memref<1x128xf32, #tpu.memory_space<vmem>>, %arg3: memref<1x128xf32, #tpu.memory_space<vmem>>, %arg4: memref<128x128xbf16, #tpu.memory_space<vmem>>, %arg5: memref<1x128xf32, #tpu.memory_space<vmem>>, %arg6: memref<1x128xf32, #tpu.memory_space<vmem>>, %arg7: memref<128x128xbf16, #tpu.memory_space<vmem>>, %arg8: memref<1x128xf32, #tpu.memory_space<vmem>>, %arg9: memref<1x128xf32, #tpu.memory_space<vmem>>, %arg10: memref<128x128xbf16, #tpu.memory_space<vmem>>, %arg11: memref<1x128xf32, #tpu.memory_space<vmem>>, %arg12: memref<16x128xbf16, #tpu.memory_space<vmem>>, %arg13: memref<16x128xf32, #tpu.memory_space<vmem>>) attributes {dimension_semantics = [], scalar_prefetch = 0 : i64, scratch_operands = 0 : i64, tpu.core_type = #tpu.core_type<tc>} {
    %0 = tpu.iota {dimensions = array<i32: 0>} : vector<16x1xi32>
    %c8_i32 = arith.constant 8 : i32
    %1 = vector.broadcast %c8_i32 : i32 to vector<16x1xi32>
    %2 = arith.cmpi slt, %0, %1 : vector<16x1xi32>
    %c0 = arith.constant 0 : index
    %c0_0 = arith.constant 0 : index
    %3 = vector.load %arg0[%c0, %c0_0] : memref<16x128xbf16, #tpu.memory_space<vmem>>, vector<16x128xbf16>
    %c0_1 = arith.constant 0 : index
    %c0_2 = arith.constant 0 : index
    %4 = vector.load %arg1[%c0_1, %c0_2] : memref<128x128xbf16, #tpu.memory_space<vmem>>, vector<128x128xbf16>
    %c0_3 = arith.constant 0 : index
    %c0_4 = arith.constant 0 : index
    %5 = vector.load %arg2[%c0_3, %c0_4] : memref<1x128xf32, #tpu.memory_space<vmem>>, vector<1x128xf32>
    %c0_5 = arith.constant 0 : index
    %c0_6 = arith.constant 0 : index
    %6 = vector.load %arg3[%c0_5, %c0_6] : memref<1x128xf32, #tpu.memory_space<vmem>>, vector<1x128xf32>
    %cst = arith.constant dense<0.000000e+00> : vector<16x128xf32>
    %7 = tpu.matmul %3, %4, %cst {dimension_numbers = #tpu.dot_dimension_numbers<[1], [0], [0], [1], [0, 0, 1, 1], [], []>} : vector<16x128xbf16>, vector<128x128xbf16>, vector<16x128xf32> -> vector<16x128xf32>
    %cst_7 = arith.constant dense<0.000000e+00> : vector<128xf32>
    %8 = vector.multi_reduction <add>, %7, %cst_7 [0] : vector<16x128xf32> to vector<128xf32>
    %9 = vector.shape_cast %8 : vector<128xf32> to vector<1x128xf32>
    %10 = arith.mulf %7, %7 : vector<16x128xf32>
    %cst_8 = arith.constant dense<0.000000e+00> : vector<128xf32>
    %11 = vector.multi_reduction <add>, %10, %cst_8 [0] : vector<16x128xf32> to vector<128xf32>
    %12 = vector.shape_cast %11 : vector<128xf32> to vector<1x128xf32>
    %cst_9 = arith.constant 1.250000e-01 : f32
    %13 = vector.broadcast %cst_9 : f32 to vector<1x128xf32>
    %14 = arith.mulf %9, %13 : vector<1x128xf32>
    %cst_10 = arith.constant 1.250000e-01 : f32
    %15 = vector.broadcast %cst_10 : f32 to vector<1x128xf32>
    %16 = arith.mulf %12, %15 : vector<1x128xf32>
    %17 = arith.mulf %14, %14 : vector<1x128xf32>
    %18 = arith.subf %16, %17 : vector<1x128xf32>
    %cst_11 = arith.constant 0.000000e+00 : f32
    %19 = vector.broadcast %cst_11 : f32 to vector<1x128xf32>
    %20 = arith.maximumf %18, %19 : vector<1x128xf32>
    %cst_12 = arith.constant 9.99999974E-6 : f32
    %21 = vector.broadcast %cst_12 : f32 to vector<1x128xf32>
    %22 = arith.addf %20, %21 : vector<1x128xf32>
    %23 = math.rsqrt %22 : vector<1x128xf32>
    %24 = arith.mulf %5, %23 : vector<1x128xf32>
    %25 = arith.mulf %14, %24 : vector<1x128xf32>
    %26 = arith.subf %6, %25 : vector<1x128xf32>
    %27 = vector.broadcast %24 : vector<1x128xf32> to vector<16x128xf32>
    %28 = arith.mulf %7, %27 : vector<16x128xf32>
    %29 = vector.broadcast %26 : vector<1x128xf32> to vector<16x128xf32>
    %30 = arith.addf %28, %29 : vector<16x128xf32>
    %cst_13 = arith.constant 0.000000e+00 : f32
    %31 = vector.broadcast %cst_13 : f32 to vector<16x128xf32>
    %32 = arith.maximumf %30, %31 : vector<16x128xf32>
    %cst_14 = arith.constant 0.000000e+00 : f32
    %33 = vector.shape_cast %2 : vector<16x1xi1> to vector<16x1xi1>
    %34 = vector.broadcast %33 : vector<16x1xi1> to vector<16x128xi1>
    %35 = vector.broadcast %cst_14 : f32 to vector<16x128xf32>
    %36 = arith.select %34, %32, %35 : vector<16x128xi1>, vector<16x128xf32>
    %37 = arith.truncf %36 : vector<16x128xf32> to vector<16x128xbf16>
    %c0_15 = arith.constant 0 : index
    %c0_16 = arith.constant 0 : index
    %38 = vector.load %arg4[%c0_15, %c0_16] : memref<128x128xbf16, #tpu.memory_space<vmem>>, vector<128x128xbf16>
    %c0_17 = arith.constant 0 : index
    %c0_18 = arith.constant 0 : index
    %39 = vector.load %arg5[%c0_17, %c0_18] : memref<1x128xf32, #tpu.memory_space<vmem>>, vector<1x128xf32>
    %c0_19 = arith.constant 0 : index
    %c0_20 = arith.constant 0 : index
    %40 = vector.load %arg6[%c0_19, %c0_20] : memref<1x128xf32, #tpu.memory_space<vmem>>, vector<1x128xf32>
    %cst_21 = arith.constant dense<0.000000e+00> : vector<16x128xf32>
    %41 = tpu.matmul %37, %38, %cst_21 {dimension_numbers = #tpu.dot_dimension_numbers<[1], [0], [0], [1], [0, 0, 1, 1], [], []>} : vector<16x128xbf16>, vector<128x128xbf16>, vector<16x128xf32> -> vector<16x128xf32>
    %cst_22 = arith.constant dense<0.000000e+00> : vector<128xf32>
    %42 = vector.multi_reduction <add>, %41, %cst_22 [0] : vector<16x128xf32> to vector<128xf32>
    %43 = vector.shape_cast %42 : vector<128xf32> to vector<1x128xf32>
    %44 = arith.mulf %41, %41 : vector<16x128xf32>
    %cst_23 = arith.constant dense<0.000000e+00> : vector<128xf32>
    %45 = vector.multi_reduction <add>, %44, %cst_23 [0] : vector<16x128xf32> to vector<128xf32>
    %46 = vector.shape_cast %45 : vector<128xf32> to vector<1x128xf32>
    %cst_24 = arith.constant 1.250000e-01 : f32
    %47 = vector.broadcast %cst_24 : f32 to vector<1x128xf32>
    %48 = arith.mulf %43, %47 : vector<1x128xf32>
    %cst_25 = arith.constant 1.250000e-01 : f32
    %49 = vector.broadcast %cst_25 : f32 to vector<1x128xf32>
    %50 = arith.mulf %46, %49 : vector<1x128xf32>
    %51 = arith.mulf %48, %48 : vector<1x128xf32>
    %52 = arith.subf %50, %51 : vector<1x128xf32>
    %cst_26 = arith.constant 0.000000e+00 : f32
    %53 = vector.broadcast %cst_26 : f32 to vector<1x128xf32>
    %54 = arith.maximumf %52, %53 : vector<1x128xf32>
    %cst_27 = arith.constant 9.99999974E-6 : f32
    %55 = vector.broadcast %cst_27 : f32 to vector<1x128xf32>
    %56 = arith.addf %54, %55 : vector<1x128xf32>
    %57 = math.rsqrt %56 : vector<1x128xf32>
    %58 = arith.mulf %39, %57 : vector<1x128xf32>
    %59 = arith.mulf %48, %58 : vector<1x128xf32>
    %60 = arith.subf %40, %59 : vector<1x128xf32>
    %61 = vector.broadcast %58 : vector<1x128xf32> to vector<16x128xf32>
    %62 = arith.mulf %41, %61 : vector<16x128xf32>
    %63 = vector.broadcast %60 : vector<1x128xf32> to vector<16x128xf32>
    %64 = arith.addf %62, %63 : vector<16x128xf32>
    %cst_28 = arith.constant 0.000000e+00 : f32
    %65 = vector.broadcast %cst_28 : f32 to vector<16x128xf32>
    %66 = arith.maximumf %64, %65 : vector<16x128xf32>
    %cst_29 = arith.constant 0.000000e+00 : f32
    %67 = vector.shape_cast %2 : vector<16x1xi1> to vector<16x1xi1>
    %68 = vector.broadcast %67 : vector<16x1xi1> to vector<16x128xi1>
    %69 = vector.broadcast %cst_29 : f32 to vector<16x128xf32>
    %70 = arith.select %68, %66, %69 : vector<16x128xi1>, vector<16x128xf32>
    %71 = arith.truncf %70 : vector<16x128xf32> to vector<16x128xbf16>
    %72 = arith.extf %71 : vector<16x128xbf16> to vector<16x128xf32>
    %c0_30 = arith.constant 0 : index
    %c0_31 = arith.constant 0 : index
    %73 = vector.load %arg13[%c0_30, %c0_31] : memref<16x128xf32, #tpu.memory_space<vmem>>, vector<16x128xf32>
    tpu.vector_store %arg13[%c0_30, %c0_31], %72 {strides = array<i32>} : memref<16x128xf32, #tpu.memory_space<vmem>>, vector<16x128xf32>,
    %c0_32 = arith.constant 0 : index
    %c0_33 = arith.constant 0 : index
    %74 = vector.load %arg7[%c0_32, %c0_33] : memref<128x128xbf16, #tpu.memory_space<vmem>>, vector<128x128xbf16>
    %c0_34 = arith.constant 0 : index
    %c0_35 = arith.constant 0 : index
    %75 = vector.load %arg8[%c0_34, %c0_35] : memref<1x128xf32, #tpu.memory_space<vmem>>, vector<1x128xf32>
    %c0_36 = arith.constant 0 : index
    %c0_37 = arith.constant 0 : index
    %76 = vector.load %arg9[%c0_36, %c0_37] : memref<1x128xf32, #tpu.memory_space<vmem>>, vector<1x128xf32>
    %cst_38 = arith.constant dense<0.000000e+00> : vector<16x128xf32>
    %77 = tpu.matmul %71, %74, %cst_38 {dimension_numbers = #tpu.dot_dimension_numbers<[1], [0], [0], [1], [0, 0, 1, 1], [], []>} : vector<16x128xbf16>, vector<128x128xbf16>, vector<16x128xf32> -> vector<16x128xf32>
    %cst_39 = arith.constant dense<0.000000e+00> : vector<128xf32>
    %78 = vector.multi_reduction <add>, %77, %cst_39 [0] : vector<16x128xf32> to vector<128xf32>
    %79 = vector.shape_cast %78 : vector<128xf32> to vector<1x128xf32>
    %80 = arith.mulf %77, %77 : vector<16x128xf32>
    %cst_40 = arith.constant dense<0.000000e+00> : vector<128xf32>
    %81 = vector.multi_reduction <add>, %80, %cst_40 [0] : vector<16x128xf32> to vector<128xf32>
    %82 = vector.shape_cast %81 : vector<128xf32> to vector<1x128xf32>
    %cst_41 = arith.constant 1.250000e-01 : f32
    %83 = vector.broadcast %cst_41 : f32 to vector<1x128xf32>
    %84 = arith.mulf %79, %83 : vector<1x128xf32>
    %cst_42 = arith.constant 1.250000e-01 : f32
    %85 = vector.broadcast %cst_42 : f32 to vector<1x128xf32>
    %86 = arith.mulf %82, %85 : vector<1x128xf32>
    %87 = arith.mulf %84, %84 : vector<1x128xf32>
    %88 = arith.subf %86, %87 : vector<1x128xf32>
    %cst_43 = arith.constant 0.000000e+00 : f32
    %89 = vector.broadcast %cst_43 : f32 to vector<1x128xf32>
    %90 = arith.maximumf %88, %89 : vector<1x128xf32>
    %cst_44 = arith.constant 9.99999974E-6 : f32
    %91 = vector.broadcast %cst_44 : f32 to vector<1x128xf32>
    %92 = arith.addf %90, %91 : vector<1x128xf32>
    %93 = math.rsqrt %92 : vector<1x128xf32>
    %94 = arith.mulf %75, %93 : vector<1x128xf32>
    %95 = arith.mulf %84, %94 : vector<1x128xf32>
    %96 = arith.subf %76, %95 : vector<1x128xf32>
    %97 = vector.broadcast %94 : vector<1x128xf32> to vector<16x128xf32>
    %98 = arith.mulf %77, %97 : vector<16x128xf32>
    %99 = vector.broadcast %96 : vector<1x128xf32> to vector<16x128xf32>
    %100 = arith.addf %98, %99 : vector<16x128xf32>
    %cst_45 = arith.constant 0.000000e+00 : f32
    %101 = vector.broadcast %cst_45 : f32 to vector<16x128xf32>
    %102 = arith.maximumf %100, %101 : vector<16x128xf32>
    %cst_46 = arith.constant 0.000000e+00 : f32
    %103 = vector.shape_cast %2 : vector<16x1xi1> to vector<16x1xi1>
    %104 = vector.broadcast %103 : vector<16x1xi1> to vector<16x128xi1>
    %105 = vector.broadcast %cst_46 : f32 to vector<16x128xf32>
    %106 = arith.select %104, %102, %105 : vector<16x128xi1>, vector<16x128xf32>
    %107 = arith.truncf %106 : vector<16x128xf32> to vector<16x128xbf16>
    %c0_47 = arith.constant 0 : index
    %c0_48 = arith.constant 0 : index
    %108 = vector.load %arg10[%c0_47, %c0_48] : memref<128x128xbf16, #tpu.memory_space<vmem>>, vector<128x128xbf16>
    %cst_49 = arith.constant dense<0.000000e+00> : vector<16x128xf32>
    %109 = tpu.matmul %107, %108, %cst_49 {dimension_numbers = #tpu.dot_dimension_numbers<[1], [0], [0], [1], [0, 0, 1, 1], [], []>} : vector<16x128xbf16>, vector<128x128xbf16>, vector<16x128xf32> -> vector<16x128xf32>
    %c0_50 = arith.constant 0 : index
    %c0_51 = arith.constant 0 : index
    %110 = vector.load %arg11[%c0_50, %c0_51] : memref<1x128xf32, #tpu.memory_space<vmem>>, vector<1x128xf32>
    %111 = vector.broadcast %110 : vector<1x128xf32> to vector<16x128xf32>
    %112 = arith.addf %109, %111 : vector<16x128xf32>
    %cst_52 = arith.constant dense<0xFF800000> : vector<16xf32>
    %113 = vector.multi_reduction <maximumf>, %112, %cst_52 [1] : vector<16x128xf32> to vector<16xf32>
    %114 = vector.shape_cast %113 : vector<16xf32> to vector<16x1xf32>
    %115 = vector.broadcast %114 : vector<16x1xf32> to vector<16x128xf32>
    %116 = arith.subf %112, %115 : vector<16x128xf32>
    %117 = math.exp %116 : vector<16x128xf32>
    %cst_53 = arith.constant dense<0.000000e+00> : vector<16xf32>
    %118 = vector.multi_reduction <add>, %117, %cst_53 [1] : vector<16x128xf32> to vector<16xf32>
    %119 = vector.shape_cast %118 : vector<16xf32> to vector<16x1xf32>
    %120 = tpu.reciprocal %119 {approx = true} : vector<16x1xf32> -> vector<16x1xf32>
    %121 = vector.broadcast %120 : vector<16x1xf32> to vector<16x128xf32>
    %122 = arith.mulf %117, %121 : vector<16x128xf32>
    %123 = arith.truncf %122 : vector<16x128xf32> to vector<16x128xbf16>
    %c0_54 = arith.constant 0 : index
    %c0_55 = arith.constant 0 : index
    %124 = vector.load %arg12[%c0_54, %c0_55] : memref<16x128xbf16, #tpu.memory_space<vmem>>, vector<16x128xbf16>
    tpu.vector_store %arg12[%c0_54, %c0_55], %123 {strides = array<i32>} : memref<16x128xbf16, #tpu.memory_space<vmem>>, vector<16x128xbf16>,
    return
  }
}

</mosaic_0001>

<llo_original>
// kernel: tpu_custom_call.1
$region0: #{tpu_custom_call.1}
  #allocation0 [shape = 'u32[]', space=smem, size = 0x4, offset = 0x4, fixed_abs, tag = 'smem constant byte address 0x4 - core index']
  #allocation1 [shape = 'u32[144,128]{1,0:T(1,128)}', space=vmem, size = 0x12000, scoped, tag = 'internal scratch']
  %s0 = inlined_call_operand.hbm [shape: bf16[16,128], index: 0, kind: input, shape index: {}]
  %s1 = inlined_call_operand.hbm [shape: bf16[128,128], index: 1, kind: input, shape index: {}]
  %s2 = inlined_call_operand.vmem [shape: f32[1,128], index: 2, kind: input, shape index: {}]
  %s3 = inlined_call_operand.vmem [shape: f32[1,128], index: 3, kind: input, shape index: {}]
  %s4 = inlined_call_operand.hbm [shape: bf16[128,128], index: 4, kind: input, shape index: {}]
  %s5 = inlined_call_operand.vmem [shape: f32[1,128], index: 5, kind: input, shape index: {}]
  %s6 = inlined_call_operand.vmem [shape: f32[1,128], index: 6, kind: input, shape index: {}]
  %s7 = inlined_call_operand.hbm [shape: bf16[128,128], index: 7, kind: input, shape index: {}]
  %s8 = inlined_call_operand.vmem [shape: f32[1,128], index: 8, kind: input, shape index: {}]
  %s9 = inlined_call_operand.vmem [shape: f32[1,128], index: 9, kind: input, shape index: {}]
  %s10 = inlined_call_operand.hbm [shape: bf16[128,128], index: 10, kind: input, shape index: {}]
  %s11 = inlined_call_operand.vmem [shape: f32[1,128], index: 11, kind: input, shape index: {}]
  %s12 = inlined_call_operand.hbm [shape: bf16[16,128], index: 12, kind: output, shape index: {0}]
  %s13 = inlined_call_operand.hbm [shape: f32[16,128], index: 13, kind: output, shape index: {1}]
  %14 = xla_tuple %s12, %s13
  %s15 = sld [smem:[#allocation0]]
  $region86: #{tpu_custom_call.1} parent=0
    _
  %s17 = ssub.s32 1, %s15
  %s18 = scalar_select 0, %s17, %s15
  $region1: #{tpu_custom_call.1} parent=0
    #allocation2 [shape = 'u8[4096]{0}', space=vmem, size = 0x1000, scoped, tag = 'input window, operand 0, single buffered']
    #allocation3 [shape = 's32[1]{0}', space=sflag, size = 0x4, scoped, tag = 'scoped memory for tpu_custom_call.1']
    #allocation4 [shape = 's32[1]{0}', space=sflag, size = 0x4, scoped, tag = 'scoped memory for tpu_custom_call.1']
    #allocation5 [shape = 'u8[32768]{0}', space=vmem, size = 0x8000, scoped, tag = 'input window, operand 1, single buffered']
    #allocation6 [shape = 's32[1]{0}', space=sflag, size = 0x4, scoped, tag = 'scoped memory for tpu_custom_call.1']
    #allocation7 [shape = 'u8[32768]{0}', space=vmem, size = 0x8000, scoped, tag = 'input window, operand 4, single buffered']
    #allocation8 [shape = 'u8[32768]{0}', space=vmem, size = 0x8000, scoped, tag = 'input window, operand 7, single buffered']
    #allocation9 [shape = 's32[1]{0}', space=sflag, size = 0x4, scoped, tag = 'scoped memory for tpu_custom_call.1']
    #allocation10 [shape = 'u8[32768]{0}', space=vmem, size = 0x8000, scoped, tag = 'input window, operand 10, single buffered']
    #allocation11 [shape = 'u8[4096]{0}', space=vmem, size = 0x1000, scoped, tag = 'output window, operand 0, single buffered']
    #allocation12 [shape = 'u8[8192]{0}', space=vmem, size = 0x2000, scoped, tag = 'output window, operand 1, single buffered']
    #allocation13 [shape = 's32[1]{0}', space=sflag, size = 0x4, scoped, tag = 'scoped memory for tpu_custom_call.1']
    %19 = vsyncpa [#allocation3], 0
    %20 = vsyncpa [#allocation6], 0
    %21 = vsyncpa [#allocation9], 0
    %22 = vsyncpa [#allocation4], 0
    %23 = vsyncpa [#allocation13], 0
    // Predicated region
    $region2: #{tpu_custom_call.1} parent=1 // pred_check
      _
    $region3: #{tpu_custom_call.1} parent=1 // pred_check_branch
      %25 = sbr.rel (0) target = $region5
    $region4: #{tpu_custom_call.1} parent=1 // pred_region
      %s27 = ssub.s32 128, 128
      %28 = vsyncadd [#allocation3], %s27
      %s29 = sshll.u32 [#allocation2], 4
      %s30 = int_to_ptr.vmem [resolvable:$true] %s29
      %35 = dma.hbm_to_vmem [thread:$0]  %s0, 128, %s30, [#allocation3], 64, 64, 4
    $region5: #{tpu_custom_call.1} parent=1 // pred_fallthru
      _
    // Predicated region
    $region6: #{tpu_custom_call.1} parent=1 // pred_check
      _
    $region7: #{tpu_custom_call.1} parent=1 // pred_check_branch
      %37 = sbr.rel (0) target = $region9
    $region8: #{tpu_custom_call.1} parent=1 // pred_region
      %s39 = ssub.s32 1024, 1024
      %40 = vsyncadd [#allocation6], %s39
      %s41 = sshll.u32 [#allocation5], 4
      %s42 = int_to_ptr.vmem [resolvable:$true] %s41
      %47 = dma.hbm_to_vmem [thread:$0]  %s1, 1024, %s42, [#allocation6], 64, 64, 4
    $region9: #{tpu_custom_call.1} parent=1 // pred_fallthru
      _
    // Predicated region
    $region10: #{tpu_custom_call.1} parent=1 // pred_check
      _
    $region11: #{tpu_custom_call.1} parent=1 // pred_check_branch
      %49 = sbr.rel (0) target = $region13
    $region12: #{tpu_custom_call.1} parent=1 // pred_region
      _
    $region13: #{tpu_custom_call.1} parent=1 // pred_fallthru
      _
    // Predicated region
    $region14: #{tpu_custom_call.1} parent=1 // pred_check
      _
    $region15: #{tpu_custom_call.1} parent=1 // pred_check_branch
      %51 = sbr.rel (0) target = $region17
    $region16: #{tpu_custom_call.1} parent=1 // pred_region
      _
    $region17: #{tpu_custom_call.1} parent=1 // pred_fallthru
      _
    // Predicated region
    $region18: #{tpu_custom_call.1} parent=1 // pred_check
      _
    $region19: #{tpu_custom_call.1} parent=1 // pred_check_branch
      %53 = sbr.rel (0) target = $region21
    $region20: #{tpu_custom_call.1} parent=1 // pred_region
      %s55 = ssub.s32 1024, 1024
      %56 = vsyncadd [#allocation6], %s55
      %s57 = sshll.u32 [#allocation7], 4
      %s58 = int_to_ptr.vmem [resolvable:$true] %s57
      %63 = dma.hbm_to_vmem [thread:$0]  %s4, 1024, %s58, [#allocation6], 64, 64, 4
    $region21: #{tpu_custom_call.1} parent=1 // pred_fallthru
      _
    // Predicated region
    $region22: #{tpu_custom_call.1} parent=1 // pred_check
      _
    $region23: #{tpu_custom_call.1} parent=1 // pred_check_branch
      %65 = sbr.rel (0) target = $region25
    $region24: #{tpu_custom_call.1} parent=1 // pred_region
      _
    $region25: #{tpu_custom_call.1} parent=1 // pred_fallthru
      _
    // Predicated region
    $region26: #{tpu_custom_call.1} parent=1 // pred_check
      _
    $region27: #{tpu_custom_call.1} parent=1 // pred_check_branch
      %67 = sbr.rel (0) target = $region29
    $region28: #{tpu_custom_call.1} parent=1 // pred_region
      _
    $region29: #{tpu_custom_call.1} parent=1 // pred_fallthru
      _
    // Predicated region
    $region30: #{tpu_custom_call.1} parent=1 // pred_check
      _
    $region31: #{tpu_custom_call.1} parent=1 // pred_check_branch
      %69 = sbr.rel (0) target = $region33
    $region32: #{tpu_custom_call.1} parent=1 // pred_region
      %s71 = ssub.s32 1024, 1024
      %72 = vsyncadd [#allocation9], %s71
      %s73 = sshll.u32 [#allocation8], 4
      %s74 = int_to_ptr.vmem [resolvable:$true] %s73
      %79 = dma.hbm_to_vmem [thread:$0]  %s7, 1024, %s74, [#allocation9], 64, 64, 4
    $region33: #{tpu_custom_call.1} parent=1 // pred_fallthru
      _
    // Predicated region
    $region34: #{tpu_custom_call.1} parent=1 // pred_check
      _
    $region35: #{tpu_custom_call.1} parent=1 // pred_check_branch
      %81 = sbr.rel (0) target = $region37
    $region36: #{tpu_custom_call.1} parent=1 // pred_region
      _
    $region37: #{tpu_custom_call.1} parent=1 // pred_fallthru
      _
    // Predicated region
    $region38: #{tpu_custom_call.1} parent=1 // pred_check
      _
    $region39: #{tpu_custom_call.1} parent=1 // pred_check_branch
      %83 = sbr.rel (0) target = $region41
    $region40: #{tpu_custom_call.1} parent=1 // pred_region
      _
    $region41: #{tpu_custom_call.1} parent=1 // pred_fallthru
      _
    // Predicated region
    $region42: #{tpu_custom_call.1} parent=1 // pred_check
      _
    $region43: #{tpu_custom_call.1} parent=1 // pred_check_branch
      %85 = sbr.rel (0) target = $region45
    $region44: #{tpu_custom_call.1} parent=1 // pred_region
      %s87 = ssub.s32 1024, 1024
      %88 = vsyncadd [#allocation9], %s87
      %s89 = sshll.u32 [#allocation10], 4
      %s90 = int_to_ptr.vmem [resolvable:$true] %s89
      %95 = dma.hbm_to_vmem [thread:$0]  %s10, 1024, %s90, [#allocation9], 64, 64, 4
    $region45: #{tpu_custom_call.1} parent=1 // pred_fallthru
      _
    // Predicated region
    $region46: #{tpu_custom_call.1} parent=1 // pred_check
      _
    $region47: #{tpu_custom_call.1} parent=1 // pred_check_branch
      %97 = sbr.rel (0) target = $region49
    $region48: #{tpu_custom_call.1} parent=1 // pred_region
      _
    $region49: #{tpu_custom_call.1} parent=1 // pred_fallthru
      _
    // Predicated region
    $region50: #{tpu_custom_call.1} parent=1 // pred_check
      _
    $region51: #{tpu_custom_call.1} parent=1 // pred_check_branch
      %99 = sbr.rel (0) target = $region53
    $region52: #{tpu_custom_call.1} parent=1 // pred_region
      %100 = dma.done [#allocation3], 128
    $region53: #{tpu_custom_call.1} parent=1 // pred_fallthru
      _
    // Predicated region
    $region54: #{tpu_custom_call.1} parent=1 // pred_check
      _
    $region55: #{tpu_custom_call.1} parent=1 // pred_check_branch
      %102 = sbr.rel (0) target = $region57
    $region56: #{tpu_custom_call.1} parent=1 // pred_region
      %103 = dma.done [#allocation6], 1024
    $region57: #{tpu_custom_call.1} parent=1 // pred_fallthru
      _
    // Predicated region
    $region58: #{tpu_custom_call.1} parent=1 // pred_check
      _
    $region59: #{tpu_custom_call.1} parent=1 // pred_check_branch
      %105 = sbr.rel (0) target = $region61
    $region60: #{tpu_custom_call.1} parent=1 // pred_region
      %106 = dma.done [#allocation6], 1024
    $region61: #{tpu_custom_call.1} parent=1 // pred_fallthru
      _
    // Predicated region
    $region62: #{tpu_custom_call.1} parent=1 // pred_check
      _
    $region63: #{tpu_custom_call.1} parent=1 // pred_check_branch
      %108 = sbr.rel (0) target = $region65
    $region64: #{tpu_custom_call.1} parent=1 // pred_region
      %109 = dma.done [#allocation9], 1024
    $region65: #{tpu_custom_call.1} parent=1 // pred_fallthru
      _
    // Predicated region
    $region66: #{tpu_custom_call.1} parent=1 // pred_check
      _
    $region67: #{tpu_custom_call.1} parent=1 // pred_check_branch
      %111 = sbr.rel (0) target = $region69
    $region68: #{tpu_custom_call.1} parent=1 // pred_region
      %112 = dma.done [#allocation9], 1024
    $region69: #{tpu_custom_call.1} parent=1 // pred_fallthru
      _
    %v114 = vlaneseq
    %v115 = vshrl.u32 %v114, 7
    %v116 = vadd.s32 %v115, 8
    %vm117 = vcmp.lt.s32.totalorder %v115, 8
    %vm118 = vcmp.lt.s32.totalorder %v116, 8
    %v119 = vld [vmem:[#allocation2] sm:$0xf]
    %v120 = vld [vmem:[#allocation2 + $0x4] sm:$0xf]
    %v121 = vld [vmem:[#allocation5] sm:$0xf]
    %v122 = vld [vmem:[#allocation5 + $0x4] sm:$0xf]
    %v123 = vld [vmem:[#allocation5 + $0x8] sm:$0xf]
    %v124 = vld [vmem:[#allocation5 + $0xc] sm:$0xf]
    %v125 = vld [vmem:[#allocation5 + $0x10] sm:$0xf]
    %v126 = vld [vmem:[#allocation5 + $0x14] sm:$0xf]
    %v127 = vld [vmem:[#allocation5 + $0x18] sm:$0xf]
    %v128 = vld [vmem:[#allocation5 + $0x1c] sm:$0xf]
    %v129 = vld [vmem:[#allocation5 + $0x20] sm:$0xf]
    %v130 = vld [vmem:[#allocation5 + $0x24] sm:$0xf]
    %v131 = vld [vmem:[#allocation5 + $0x28] sm:$0xf]
    %v132 = vld [vmem:[#allocation5 + $0x2c] sm:$0xf]
    %v133 = vld [vmem:[#allocation5 + $0x30] sm:$0xf]
    %v134 = vld [vmem:[#allocation5 + $0x34] sm:$0xf]
    %v135 = vld [vmem:[#allocation5 + $0x38] sm:$0xf]
    %v136 = vld [vmem:[#allocation5 + $0x3c] sm:$0xf]
    %v137 = vld [vmem:[%s2] sm:$0x1]
    %v138 = vld [vmem:[%s3] sm:$0x1]
    %v141 = vunpack.c.l.b16 %v119
    %v142 = vunpack.c.l.b16 %v120
    %v143 = vpack.c.b16 %v142, %v141
    %v161 = vunpack.c.l.b16 %v121
    %v162 = vunpack.c.l.b16 %v122
    %v163 = vunpack.c.l.b16 %v123
    %v164 = vunpack.c.l.b16 %v124
    %v165 = vunpack.c.l.b16 %v125
    %v166 = vunpack.c.l.b16 %v126
    %v167 = vunpack.c.l.b16 %v127
    %v168 = vunpack.c.l.b16 %v128
    %v169 = vunpack.c.l.b16 %v129
    %v170 = vunpack.c.l.b16 %v130
    %v171 = vunpack.c.l.b16 %v131
    %v172 = vunpack.c.l.b16 %v132
    %v173 = vunpack.c.l.b16 %v133
    %v174 = vunpack.c.l.b16 %v134
    %v175 = vunpack.c.l.b16 %v135
    %v176 = vunpack.c.l.b16 %v136
    %v177 = vpack.c.b16 %v162, %v161
    %v178 = vpack.c.b16 %v164, %v163
    %v179 = vpack.c.b16 %v166, %v165
    %v180 = vpack.c.b16 %v168, %v167
    %v181 = vpack.c.b16 %v170, %v169
    %v182 = vpack.c.b16 %v172, %v171
    %v183 = vpack.c.b16 %v174, %v173
    %v184 = vpack.c.b16 %v176, %v175
    %193 = vmatprep.subr.bf16.mxu0 0
    %194 = vmatpush1.bf16.msra.mxu0 %v177
    %195 = vmatprep.subr.bf16.mxu0 0
    %196 = vmatpush1.bf16.msra.mxu0 %v178
    %197 = vmatprep.subr.bf16.mxu0 0
    %198 = vmatpush1.bf16.msra.mxu0 %v179
    %199 = vmatprep.subr.bf16.mxu0 0
    %200 = vmatpush1.bf16.msra.mxu0 %v180
    %201 = vmatprep.subr.bf16.mxu0 0
    %202 = vmatpush1.bf16.msra.mxu0 %v181
    %203 = vmatprep.subr.bf16.mxu0 0
    %204 = vmatpush1.bf16.msra.mxu0 %v182
    %205 = vmatprep.subr.bf16.mxu0 0
    %206 = vmatpush1.bf16.msra.mxu0 %v183
    %207 = vmatprep.subr.bf16.mxu0 0
    %208 = vmatpush1.bf16.msra.mxu0 %v184
    %209 = vmatprep.subr.bf16.mxu0 0
    %210 = vmatpush1.bf16.msra.mxu0 0
    %211 = vmatprep.subr.bf16.mxu0 0
    %212 = vmatpush1.bf16.msra.mxu0 0
    %213 = vmatprep.subr.bf16.mxu0 0
    %214 = vmatpush1.bf16.msra.mxu0 0
    %215 = vmatprep.subr.bf16.mxu0 0
    %216 = vmatpush1.bf16.msra.mxu0 0
    %217 = vmatprep.subr.bf16.mxu0 0
    %218 = vmatpush1.bf16.msra.mxu0 0
    %219 = vmatprep.subr.bf16.mxu0 0
    %220 = vmatpush1.bf16.msra.mxu0 0
    %221 = vmatprep.subr.bf16.mxu0 0
    %222 = vmatpush1.bf16.msra.mxu0 0
    %223 = vmatprep.subr.bf16.mxu0 0
    %224 = vmatpush1.bf16.msra.mxu0 0
    %225 = vmatprep.mubr.bf16.mxu0 0
    %226 = vmatmul.mubr.bf16.gmra.mrb[0].mxu0 %v143
    %v227 = vpop.f32.mrb[0].mxu0
    %v228 = vadd.f32 0.0, %v227
    %v229 = vpop.f32.mrb[0].mxu0
    %v230 = vpop.f32.mrb[0].mxu0
    %v231 = vadd.f32 0.0, %v230
    %v232 = vpop.f32.mrb[0].mxu0
    %233 = vdwg.mxu0
    %v234 = vadd.f32 %v228, %v231
    %v235 = vrot.slane %v234, 4
    %v236 = vadd.f32 %v234, %v235
    %v237 = vrot.slane %v236, 2
    %v238 = vadd.f32 %v236, %v237
    %v239 = vrot.slane %v238, 1
    %v240 = vadd.f32 %v238, %v239
    %v241 = vmul.f32 %v228, %v228
    %v242 = vmul.f32 %v231, %v231
    %v243 = vadd.f32 %v241, %v242
    %v244 = vrot.slane %v243, 4
    %v245 = vadd.f32 %v243, %v244
    %v246 = vrot.slane %v245, 2
    %v247 = vadd.f32 %v245, %v246
    %v248 = vrot.slane %v247, 1
    %v249 = vadd.f32 %v247, %v248
    %v250 = vmul.f32 %v240, 0.125
    %v251 = vmul.f32 %v249, 0.125
    %v252 = vmul.f32 %v250, %v250
    %v253 = vsub.f32 %v251, %v252
    %v254 = vmax.f32 %v253, 0.0
    %v255 = vadd.f32 %v254, 1e-05
    %v256 = vrsqrt.pop %v255
    %v257 = vmul.f32 %v137, %v256
    %v258 = vmul.f32 %v250, %v257
    %v259 = vsub.f32 %v138, %v258
    %v261 = vlaneseq
    %v262 = vshrl.u32 %v261, 7
    %v263 = vsub.s32 0, %v262
    %v264 = vrot.slane %v257, %v263
    %v266 = vmul.f32 %v228, %v264
    %v267 = vmul.f32 %v231, %v264
    %v269 = vlaneseq
    %v270 = vshrl.u32 %v269, 7
    %v271 = vsub.s32 0, %v270
    %v272 = vrot.slane %v259, %v271
    %v274 = vadd.f32 %v266, %v272
    %v275 = vadd.f32 %v267, %v272
    %v276 = vmax.f32 %v274, 0.0
    %v277 = vmax.f32 %v275, 0.0
    %v278 = vsel %vm117, 1, 0
    %v279 = vsel %vm118, 1, 0
    %vm280 = vcmp.eq.s32.totalorder %v278, 1
    %vm281 = vcmp.eq.s32.totalorder %v279, 1
    %v282 = vsel %vm280, %v276, 0.0
    %v283 = vsel %vm281, %v277, 0.0
    %v284 = vpack.c.bf16 %v283, %v282
    %v285 = vld [vmem:[#allocation7] sm:$0xf]
    %v286 = vld [vmem:[#allocation7 + $0x4] sm:$0xf]
    %v287 = vld [vmem:[#allocation7 + $0x8] sm:$0xf]
    %v288 = vld [vmem:[#allocation7 + $0xc] sm:$0xf]
    %v289 = vld [vmem:[#allocation7 + $0x10] sm:$0xf]
    %v290 = vld [vmem:[#allocation7 + $0x14] sm:$0xf]
    %v291 = vld [vmem:[#allocation7 + $0x18] sm:$0xf]
    %v292 = vld [vmem:[#allocation7 + $0x1c] sm:$0xf]
    %v293 = vld [vmem:[#allocation7 + $0x20] sm:$0xf]
    %v294 = vld [vmem:[#allocation7 + $0x24] sm:$0xf]
    %v295 = vld [vmem:[#allocation7 + $0x28] sm:$0xf]
    %v296 = vld [vmem:[#allocation7 + $0x2c] sm:$0xf]
    %v297 = vld [vmem:[#allocation7 + $0x30] sm:$0xf]
    %v298 = vld [vmem:[#allocation7 + $0x34] sm:$0xf]
    %v299 = vld [vmem:[#allocation7 + $0x38] sm:$0xf]
    %v300 = vld [vmem:[#allocation7 + $0x3c] sm:$0xf]
    %v301 = vld [vmem:[%s5] sm:$0x1]
    %v302 = vld [vmem:[%s6] sm:$0x1]
    %v319 = vunpack.c.l.b16 %v285
    %v320 = vunpack.c.l.b16 %v286
    %v321 = vunpack.c.l.b16 %v287
    %v322 = vunpack.c.l.b16 %v288
    %v323 = vunpack.c.l.b16 %v289
    %v324 = vunpack.c.l.b16 %v290
    %v325 = vunpack.c.l.b16 %v291
    %v326 = vunpack.c.l.b16 %v292
    %v327 = vunpack.c.l.b16 %v293
    %v328 = vunpack.c.l.b16 %v294
    %v329 = vunpack.c.l.b16 %v295
    %v330 = vunpack.c.l.b16 %v296
    %v331 = vunpack.c.l.b16 %v297
    %v332 = vunpack.c.l.b16 %v298
    %v333 = vunpack.c.l.b16 %v299
    %v334 = vunpack.c.l.b16 %v300
    %v335 = vpack.c.b16 %v320, %v319
    %v336 = vpack.c.b16 %v322, %v321
    %v337 = vpack.c.b16 %v324, %v323
    %v338 = vpack.c.b16 %v326, %v325
    %v339 = vpack.c.b16 %v328, %v327
    %v340 = vpack.c.b16 %v330, %v329
    %v341 = vpack.c.b16 %v332, %v331
    %v342 = vpack.c.b16 %v334, %v333
    %351 = vmatprep.subr.bf16.mxu0 0
    %352 = vmatpush1.bf16.msra.mxu0 %v335
    %353 = vmatprep.subr.bf16.mxu0 0
    %354 = vmatpush1.bf16.msra.mxu0 %v336
    %355 = vmatprep.subr.bf16.mxu0 0
    %356 = vmatpush1.bf16.msra.mxu0 %v337
    %357 = vmatprep.subr.bf16.mxu0 0
    %358 = vmatpush1.bf16.msra.mxu0 %v338
    %359 = vmatprep.subr.bf16.mxu0 0
    %360 = vmatpush1.bf16.msra.mxu0 %v339
    %361 = vmatprep.subr.bf16.mxu0 0
    %362 = vmatpush1.bf16.msra.mxu0 %v340
    %363 = vmatprep.subr.bf16.mxu0 0
    %364 = vmatpush1.bf16.msra.mxu0 %v341
    %365 = vmatprep.subr.bf16.mxu0 0
    %366 = vmatpush1.bf16.msra.mxu0 %v342
    %367 = vmatprep.subr.bf16.mxu0 0
    %368 = vmatpush1.bf16.msra.mxu0 0
    %369 = vmatprep.subr.bf16.mxu0 0
    %370 = vmatpush1.bf16.msra.mxu0 0
    %371 = vmatprep.subr.bf16.mxu0 0
    %372 = vmatpush1.bf16.msra.mxu0 0
    %373 = vmatprep.subr.bf16.mxu0 0
    %374 = vmatpush1.bf16.msra.mxu0 0
    %375 = vmatprep.subr.bf16.mxu0 0
    %376 = vmatpush1.bf16.msra.mxu0 0
    %377 = vmatprep.subr.bf16.mxu0 0
    %378 = vmatpush1.bf16.msra.mxu0 0
    %379 = vmatprep.subr.bf16.mxu0 0
    %380 = vmatpush1.bf16.msra.mxu0 0
    %381 = vmatprep.subr.bf16.mxu0 0
    %382 = vmatpush1.bf16.msra.mxu0 0
    %383 = vmatprep.mubr.bf16.mxu0 0
    %384 = vmatmul.mubr.bf16.gmra.mrb[0].mxu0 %v284
    %v385 = vpop.f32.mrb[0].mxu0
    %v386 = vadd.f32 0.0, %v385
    %v387 = vpop.f32.mrb[0].mxu0
    %v388 = vpop.f32.mrb[0].mxu0
    %v389 = vadd.f32 0.0, %v388
    %v390 = vpop.f32.mrb[0].mxu0
    %391 = vdwg.mxu0
    %v392 = vadd.f32 %v386, %v389
    %v393 = vrot.slane %v392, 4
    %v394 = vadd.f32 %v392, %v393
    %v395 = vrot.slane %v394, 2
    %v396 = vadd.f32 %v394, %v395
    %v397 = vrot.slane %v396, 1
    %v398 = vadd.f32 %v396, %v397
    %v399 = vmul.f32 %v386, %v386
    %v400 = vmul.f32 %v389, %v389
    %v401 = vadd.f32 %v399, %v400
    %v402 = vrot.slane %v401, 4
    %v403 = vadd.f32 %v401, %v402
    %v404 = vrot.slane %v403, 2
    %v405 = vadd.f32 %v403, %v404
    %v406 = vrot.slane %v405, 1
    %v407 = vadd.f32 %v405, %v406
    %v408 = vmul.f32 %v398, 0.125
    %v409 = vmul.f32 %v407, 0.125
    %v410 = vmul.f32 %v408, %v408
    %v411 = vsub.f32 %v409, %v410
    %v412 = vmax.f32 %v411, 0.0
    %v413 = vadd.f32 %v412, 1e-05
    %v414 = vrsqrt.pop %v413
    %v415 = vmul.f32 %v301, %v414
    %v416 = vmul.f32 %v408, %v415
    %v417 = vsub.f32 %v302, %v416
    %v419 = vlaneseq
    %v420 = vshrl.u32 %v419, 7
    %v421 = vsub.s32 0, %v420
    %v422 = vrot.slane %v415, %v421
    %v424 = vmul.f32 %v386, %v422
    %v425 = vmul.f32 %v389, %v422
    %v427 = vlaneseq
    %v428 = vshrl.u32 %v427, 7
    %v429 = vsub.s32 0, %v428
    %v430 = vrot.slane %v417, %v429
    %v432 = vadd.f32 %v424, %v430
    %v433 = vadd.f32 %v425, %v430
    %v434 = vmax.f32 %v432, 0.0
    %v435 = vmax.f32 %v433, 0.0
    %v436 = vsel %vm280, %v434, 0.0
    %v437 = vsel %vm281, %v435, 0.0
    %v438 = vpack.c.bf16 %v437, %v436
    %v439 = vunpack.c.l.bf16 %v438
    %v440 = vunpack.c.h.bf16 %v438
    %441 = vst [vmem:[#allocation12] sm:$0xff] %v439
    %442 = vst [vmem:[#allocation12 + $0x8] sm:$0xff] %v440
    %v443 = vld [vmem:[#allocation8] sm:$0xf]
    %v444 = vld [vmem:[#allocation8 + $0x4] sm:$0xf]
    %v445 = vld [vmem:[#allocation8 + $0x8] sm:$0xf]
    %v446 = vld [vmem:[#allocation8 + $0xc] sm:$0xf]
    %v447 = vld [vmem:[#allocation8 + $0x10] sm:$0xf]
    %v448 = vld [vmem:[#allocation8 + $0x14] sm:$0xf]
    %v449 = vld [vmem:[#allocation8 + $0x18] sm:$0xf]
    %v450 = vld [vmem:[#allocation8 + $0x1c] sm:$0xf]
    %v451 = vld [vmem:[#allocation8 + $0x20] sm:$0xf]
    %v452 = vld [vmem:[#allocation8 + $0x24] sm:$0xf]
    %v453 = vld [vmem:[#allocation8 + $0x28] sm:$0xf]
    %v454 = vld [vmem:[#allocation8 + $0x2c] sm:$0xf]
    %v455 = vld [vmem:[#allocation8 + $0x30] sm:$0xf]
    %v456 = vld [vmem:[#allocation8 + $0x34] sm:$0xf]
    %v457 = vld [vmem:[#allocation8 + $0x38] sm:$0xf]
    %v458 = vld [vmem:[#allocation8 + $0x3c] sm:$0xf]
    %v459 = vld [vmem:[%s8] sm:$0x1]
    %v460 = vld [vmem:[%s9] sm:$0x1]
    %v477 = vunpack.c.l.b16 %v443
    %v478 = vunpack.c.l.b16 %v444
    %v479 = vunpack.c.l.b16 %v445
    %v480 = vunpack.c.l.b16 %v446
    %v481 = vunpack.c.l.b16 %v447
    %v482 = vunpack.c.l.b16 %v448
    %v483 = vunpack.c.l.b16 %v449
    %v484 = vunpack.c.l.b16 %v450
    %v485 = vunpack.c.l.b16 %v451
    %v486 = vunpack.c.l.b16 %v452
    %v487 = vunpack.c.l.b16 %v453
    %v488 = vunpack.c.l.b16 %v454
    %v489 = vunpack.c.l.b16 %v455
    %v490 = vunpack.c.l.b16 %v456
    %v491 = vunpack.c.l.b16 %v457
    %v492 = vunpack.c.l.b16 %v458
    %v493 = vpack.c.b16 %v478, %v477
    %v494 = vpack.c.b16 %v480, %v479
    %v495 = vpack.c.b16 %v482, %v481
    %v496 = vpack.c.b16 %v484, %v483
    %v497 = vpack.c.b16 %v486, %v485
    %v498 = vpack.c.b16 %v488, %v487
    %v499 = vpack.c.b16 %v490, %v489
    %v500 = vpack.c.b16 %v492, %v491
    %509 = vmatprep.subr.bf16.mxu0 0
    %510 = vmatpush1.bf16.msra.mxu0 %v493
    %511 = vmatprep.subr.bf16.mxu0 0
    %512 = vmatpush1.bf16.msra.mxu0 %v494
    %513 = vmatprep.subr.bf16.mxu0 0
    %514 = vmatpush1.bf16.msra.mxu0 %v495
    %515 = vmatprep.subr.bf16.mxu0 0
    %516 = vmatpush1.bf16.msra.mxu0 %v496
    %517 = vmatprep.subr.bf16.mxu0 0
    %518 = vmatpush1.bf16.msra.mxu0 %v497
    %519 = vmatprep.subr.bf16.mxu0 0
    %520 = vmatpush1.bf16.msra.mxu0 %v498
    %521 = vmatprep.subr.bf16.mxu0 0
    %522 = vmatpush1.bf16.msra.mxu0 %v499
    %523 = vmatprep.subr.bf16.mxu0 0
    %524 = vmatpush1.bf16.msra.mxu0 %v500
    %525 = vmatprep.subr.bf16.mxu0 0
    %526 = vmatpush1.bf16.msra.mxu0 0
    %527 = vmatprep.subr.bf16.mxu0 0
    %528 = vmatpush1.bf16.msra.mxu0 0
    %529 = vmatprep.subr.bf16.mxu0 0
    %530 = vmatpush1.bf16.msra.mxu0 0
    %531 = vmatprep.subr.bf16.mxu0 0
    %532 = vmatpush1.bf16.msra.mxu0 0
    %533 = vmatprep.subr.bf16.mxu0 0
    %534 = vmatpush1.bf16.msra.mxu0 0
    %535 = vmatprep.subr.bf16.mxu0 0
    %536 = vmatpush1.bf16.msra.mxu0 0
    %537 = vmatprep.subr.bf16.mxu0 0
    %538 = vmatpush1.bf16.msra.mxu0 0
    %539 = vmatprep.subr.bf16.mxu0 0
    %540 = vmatpush1.bf16.msra.mxu0 0
    %541 = vmatprep.mubr.bf16.mxu0 0
    %542 = vmatmul.mubr.bf16.gmra.mrb[0].mxu0 %v438
    %v543 = vpop.f32.mrb[0].mxu0
    %v544 = vadd.f32 0.0, %v543
    %v545 = vpop.f32.mrb[0].mxu0
    %v546 = vpop.f32.mrb[0].mxu0
    %v547 = vadd.f32 0.0, %v546
    %v548 = vpop.f32.mrb[0].mxu0
    %549 = vdwg.mxu0
    %v550 = vadd.f32 %v544, %v547
    %v551 = vrot.slane %v550, 4
    %v552 = vadd.f32 %v550, %v551
    %v553 = vrot.slane %v552, 2
    %v554 = vadd.f32 %v552, %v553
    %v555 = vrot.slane %v554, 1
    %v556 = vadd.f32 %v554, %v555
    %v557 = vmul.f32 %v544, %v544
    %v558 = vmul.f32 %v547, %v547
    %v559 = vadd.f32 %v557, %v558
    %v560 = vrot.slane %v559, 4
    %v561 = vadd.f32 %v559, %v560
    %v562 = vrot.slane %v561, 2
    %v563 = vadd.f32 %v561, %v562
    %v564 = vrot.slane %v563, 1
    %v565 = vadd.f32 %v563, %v564
    %v566 = vmul.f32 %v556, 0.125
    %v567 = vmul.f32 %v565, 0.125
    %v568 = vmul.f32 %v566, %v566
    %v569 = vsub.f32 %v567, %v568
    %v570 = vmax.f32 %v569, 0.0
    %v571 = vadd.f32 %v570, 1e-05
    %v572 = vrsqrt.pop %v571
    %v573 = vmul.f32 %v459, %v572
    %v574 = vmul.f32 %v566, %v573
    %v575 = vsub.f32 %v460, %v574
    %v577 = vlaneseq
    %v578 = vshrl.u32 %v577, 7
    %v579 = vsub.s32 0, %v578
    %v580 = vrot.slane %v573, %v579
    %v582 = vmul.f32 %v544, %v580
    %v583 = vmul.f32 %v547, %v580
    %v585 = vlaneseq
    %v586 = vshrl.u32 %v585, 7
    %v587 = vsub.s32 0, %v586
    %v588 = vrot.slane %v575, %v587
    %v590 = vadd.f32 %v582, %v588
    %v591 = vadd.f32 %v583, %v588
    %v592 = vmax.f32 %v590, 0.0
    %v593 = vmax.f32 %v591, 0.0
    %v594 = vsel %vm280, %v592, 0.0
    %v595 = vsel %vm281, %v593, 0.0
    %v596 = vpack.c.bf16 %v595, %v594
    %v597 = vld [vmem:[#allocation10] sm:$0xf]
    %v598 = vld [vmem:[#allocation10 + $0x4] sm:$0xf]
    %v599 = vld [vmem:[#allocation10 + $0x8] sm:$0xf]
    %v600 = vld [vmem:[#allocation10 + $0xc] sm:$0xf]
    %v601 = vld [vmem:[#allocation10 + $0x10] sm:$0xf]
    %v602 = vld [vmem:[#allocation10 + $0x14] sm:$0xf]
    %v603 = vld [vmem:[#allocation10 + $0x18] sm:$0xf]
    %v604 = vld [vmem:[#allocation10 + $0x1c] sm:$0xf]
    %v605 = vld [vmem:[#allocation10 + $0x20] sm:$0xf]
    %v606 = vld [vmem:[#allocation10 + $0x24] sm:$0xf]
    %v607 = vld [vmem:[#allocation10 + $0x28] sm:$0xf]
    %v608 = vld [vmem:[#allocation10 + $0x2c] sm:$0xf]
    %v609 = vld [vmem:[#allocation10 + $0x30] sm:$0xf]
    %v610 = vld [vmem:[#allocation10 + $0x34] sm:$0xf]
    %v611 = vld [vmem:[#allocation10 + $0x38] sm:$0xf]
    %v612 = vld [vmem:[#allocation10 + $0x3c] sm:$0xf]
    %v613 = vld [vmem:[%s11] sm:$0x1]
    %v615 = vlaneseq
    %v616 = vshrl.u32 %v615, 7
    %v617 = vsub.s32 0, %v616
    %v618 = vrot.slane %v613, %v617
    %v636 = vunpack.c.l.b16 %v597
    %v637 = vunpack.c.l.b16 %v598
    %v638 = vunpack.c.l.b16 %v599
    %v639 = vunpack.c.l.b16 %v600
    %v640 = vunpack.c.l.b16 %v601
    %v641 = vunpack.c.l.b16 %v602
    %v642 = vunpack.c.l.b16 %v603
    %v643 = vunpack.c.l.b16 %v604
    %v644 = vunpack.c.l.b16 %v605
    %v645 = vunpack.c.l.b16 %v606
    %v646 = vunpack.c.l.b16 %v607
    %v647 = vunpack.c.l.b16 %v608
    %v648 = vunpack.c.l.b16 %v609
    %v649 = vunpack.c.l.b16 %v610
    %v650 = vunpack.c.l.b16 %v611
    %v651 = vunpack.c.l.b16 %v612
    %v652 = vpack.c.b16 %v637, %v636
    %v653 = vpack.c.b16 %v639, %v638
    %v654 = vpack.c.b16 %v641, %v640
    %v655 = vpack.c.b16 %v643, %v642
    %v656 = vpack.c.b16 %v645, %v644
    %v657 = vpack.c.b16 %v647, %v646
    %v658 = vpack.c.b16 %v649, %v648
    %v659 = vpack.c.b16 %v651, %v650
    %668 = vmatprep.subr.bf16.mxu0 0
    %669 = vmatpush1.bf16.msra.mxu0 %v652
    %670 = vmatprep.subr.bf16.mxu0 0
    %671 = vmatpush1.bf16.msra.mxu0 %v653
    %672 = vmatprep.subr.bf16.mxu0 0
    %673 = vmatpush1.bf16.msra.mxu0 %v654
    %674 = vmatprep.subr.bf16.mxu0 0
    %675 = vmatpush1.bf16.msra.mxu0 %v655
    %676 = vmatprep.subr.bf16.mxu0 0
    %677 = vmatpush1.bf16.msra.mxu0 %v656
    %678 = vmatprep.subr.bf16.mxu0 0
    %679 = vmatpush1.bf16.msra.mxu0 %v657
    %680 = vmatprep.subr.bf16.mxu0 0
    %681 = vmatpush1.bf16.msra.mxu0 %v658
    %682 = vmatprep.subr.bf16.mxu0 0
    %683 = vmatpush1.bf16.msra.mxu0 %v659
    %684 = vmatprep.subr.bf16.mxu0 0
    %685 = vmatpush1.bf16.msra.mxu0 0
    %686 = vmatprep.subr.bf16.mxu0 0
    %687 = vmatpush1.bf16.msra.mxu0 0
    %688 = vmatprep.subr.bf16.mxu0 0
    %689 = vmatpush1.bf16.msra.mxu0 0
    %690 = vmatprep.subr.bf16.mxu0 0
    %691 = vmatpush1.bf16.msra.mxu0 0
    %692 = vmatprep.subr.bf16.mxu0 0
    %693 = vmatpush1.bf16.msra.mxu0 0
    %694 = vmatprep.subr.bf16.mxu0 0
    %695 = vmatpush1.bf16.msra.mxu0 0
    %696 = vmatprep.subr.bf16.mxu0 0
    %697 = vmatpush1.bf16.msra.mxu0 0
    %698 = vmatprep.subr.bf16.mxu0 0
    %699 = vmatpush1.bf16.msra.mxu0 0
    %700 = vmatprep.mubr.bf16.mxu0 0
    %701 = vmatmul.mubr.bf16.gmra.mrb[0].mxu0 %v596
    %v702 = vpop.f32.mrb[0].mxu0
    %v703 = vadd.f32 %v618, %v702
    %v704 = vpop.f32.mrb[0].mxu0
    %v705 = vpop.f32.mrb[0].mxu0
    %v706 = vadd.f32 %v618, %v705
    %v707 = vpop.f32.mrb[0].mxu0
    %708 = vdwg.mxu0
    %709 = vmax.xlane.f32.xlu0 %v703
    %v710 = vpop.xlane.xlu0 %709
    %711 = vmax.xlane.f32.xlu0 %v706
    %v712 = vpop.xlane.xlu0 %711
    %v713 = vsub.f32 %v703, %v710
    %v714 = vsub.f32 %v706, %v712
    %v715 = vmul.f32 %v713, 1.442695
    %v716 = vpow.pop %v715
    %v717 = vmul.f32 %v714, 1.442695
    %v718 = vpow.pop %v717
    %719 = vadd.xlane.f32.xlu0 %v716
    %v720 = vpop.xlane.xlu0 %719
    %721 = vadd.xlane.f32.xlu0 %v718
    %v722 = vpop.xlane.xlu0 %721
    %v723 = vrcp.pop %v720
    %v724 = vrcp.pop %v722
    %v725 = vmul.f32 %v716, %v723
    %v726 = vmul.f32 %v718, %v724
    %v727 = vpack.c.bf16 %v726, %v725
    %v729 = vunpack.c.l.b16 %v727
    %v730 = vunpack.c.h.b16 %v727
    %v731 = vpack.c.b16 %v729, %v729
    %v732 = vpack.c.b16 %v730, %v730
    %735 = vst [vmem:[#allocation11] sm:$0xf] %v731
    %736 = vst [vmem:[#allocation11 + $0x4] sm:$0xf] %v732
    // Predicated region
    $region70: #{tpu_custom_call.1} parent=1 // pred_check
      _
    $region71: #{tpu_custom_call.1} parent=1 // pred_check_branch
      %738 = sbr.rel (0) target = $region73
    $region72: #{tpu_custom_call.1} parent=1 // pred_region
      %s740 = ssub.s32 128, 128
      %741 = vsyncadd [#allocation4], %s740
      %s742 = sshll.u32 [#allocation11], 4
      %s743 = int_to_ptr.vmem [resolvable:$true] %s742
      %748 = dma.vmem_to_hbm [thread:$0]  %s743, 128, %s12, [#allocation4], 64, 64, 4
    $region73: #{tpu_custom_call.1} parent=1 // pred_fallthru
      _
    // Predicated region
    $region74: #{tpu_custom_call.1} parent=1 // pred_check
      _
    $region75: #{tpu_custom_call.1} parent=1 // pred_check_branch
      %750 = sbr.rel (0) target = $region77
    $region76: #{tpu_custom_call.1} parent=1 // pred_region
      %s752 = ssub.s32 256, 256
      %753 = vsyncadd [#allocation13], %s752
      %s754 = sshll.u32 [#allocation12], 4
      %s755 = int_to_ptr.vmem [resolvable:$true] %s754
      %760 = dma.vmem_to_hbm [thread:$0]  %s755, 256, %s13, [#allocation13], 128, 128, 8
    $region77: #{tpu_custom_call.1} parent=1 // pred_fallthru
      _
    // Predicated region
    $region78: #{tpu_custom_call.1} parent=1 // pred_check
      _
    $region79: #{tpu_custom_call.1} parent=1 // pred_check_branch
      %762 = sbr.rel (0) target = $region81
    $region80: #{tpu_custom_call.1} parent=1 // pred_region
      %763 = dma.done [#allocation4], 128
    $region81: #{tpu_custom_call.1} parent=1 // pred_fallthru
      _
    // Predicated region
    $region82: #{tpu_custom_call.1} parent=1 // pred_check
      _
    $region83: #{tpu_custom_call.1} parent=1 // pred_check_branch
      %765 = sbr.rel (0) target = $region85
    $region84: #{tpu_custom_call.1} parent=1 // pred_region
      %766 = dma.done [#allocation13], 256
    $region85: #{tpu_custom_call.1} parent=1 // pred_fallthru
      _
    %767 = vsyncpa [#allocation3], 1
    %768 = vsyncpa [#allocation6], 1
    %769 = vsyncpa [#allocation9], 1
    %770 = vsyncpa [#allocation4], 1
    %771 = vsyncpa [#allocation13], 1

</llo_original>
